<compile_context>
chip_gen: v6e
topology: v6e:2x2x1
jax: 0.10.0
libtpu: 0.0.40
codegen_flags: <defaults>
</compile_context>

<pallas_src>
import functools

import jax
import jax.numpy as jnp
from jax import lax
from jax.experimental import pallas as pl
from jax.experimental.pallas import tpu as pltpu


def _focal_loss_kernel(logits_ref, tgt_ref, loss_ref, *, alpha, gamma):
    logits = logits_ref[...].astype(jnp.float32)          # (TB, C)
    tb, c = logits.shape

    # targets arrive lane-dense as (1, 1, TB); move them to the sublane axis
    # (TB, 1) for the per-row one-hot compare.  The transpose rides the XLU,
    # which has plenty of slack in this bandwidth-bound kernel.
    tgt_row = tgt_ref[...].reshape(1, tb)                  # (1, TB) int32
    tgt_col = jnp.transpose(tgt_row)                       # (TB, 1)

    # gather logit of the target class via a one-hot mask (no dynamic gather)
    col = lax.broadcasted_iota(jnp.int32, (tb, c), 1)
    onehot = col == tgt_col
    tgt_logit = jnp.sum(jnp.where(onehot, logits, 0.0), axis=-1, keepdims=True)

    # numerically-stable cross entropy: logsumexp(logits) - logit[target]
    m = jnp.max(logits, axis=-1, keepdims=True)
    lse = m + jnp.log(jnp.sum(jnp.exp(logits - m), axis=-1, keepdims=True))
    ce = jnp.maximum(lse - tgt_logit, 0.0)                 # clamp fp-rounding negatives

    pt = jnp.exp(-ce)
    one_minus_pt = 1.0 - pt                                # in [0, 1) after clamp
    if float(gamma) == int(gamma) and int(gamma) >= 0:
        w = one_minus_pt ** int(gamma)                     # integer_pow -> VPU multiplies
    else:
        w = jnp.maximum(one_minus_pt, 0.0) ** float(gamma)
    f_loss = w * ce
    if alpha != 1.0:
        f_loss = alpha * f_loss                            # (TB, 1)

    # store lane-dense: (TB, 1) -> (1, 1, TB)
    loss_ref[...] = jnp.transpose(f_loss).reshape(1, 1, tb)


def focal_loss(logits, targets, *, alpha=1.0, gamma=2.0, reduce=True,
               block_n=None, vmem_row_budget_bytes=4 << 20):
    """Pallas implementation of FocalLoss.forward.

    logits:  (N, C) float (f32 or bf16 -- cast to f32 in-kernel)
    targets: (N,)   int class indices
    returns scalar mean focal loss if reduce else per-sample losses (N,)
    """
    n, c = logits.shape
    row_align = 16 if jnp.dtype(logits.dtype).itemsize < 4 else 8

    if block_n is None:
        # Size the batch tile from a fixed f32 working-set budget per block
        # (conservative enough for v7x's 64 MiB VMEM, double-buffered inputs
        # plus elementwise temps stay well under the limit below).
        rows = max(row_align, vmem_row_budget_bytes // (c * 4))
        rows -= rows % row_align
        n_ceil = pl.cdiv(n, row_align) * row_align
        block_n = min(rows, n_ceil)
        # re-balance so padding stays below one row_align group per block
        num_blocks = pl.cdiv(n, block_n)
        block_n = pl.cdiv(pl.cdiv(n, num_blocks), row_align) * row_align
    else:
        assert block_n % row_align == 0, "block_n must respect sublane packing"

    num_blocks = pl.cdiv(n, block_n)
    n_pad = num_blocks * block_n

    if n_pad != n:
        logits = jnp.pad(logits, ((0, n_pad - n), (0, 0)))
        targets = jnp.pad(targets, ((0, n_pad - n),))

    tgt3d = targets.astype(jnp.int32).reshape(num_blocks, 1, block_n)

    kernel = functools.partial(_focal_loss_kernel, alpha=float(alpha), gamma=float(gamma))

    per_sample = pl.pallas_call(
        kernel,
        out_shape=jax.ShapeDtypeStruct((num_blocks, 1, block_n), jnp.float32),
        grid_spec=pltpu.PrefetchScalarGridSpec(
            num_scalar_prefetch=0,
            grid=(num_blocks,),
            in_specs=[
                pl.BlockSpec((block_n, c), lambda i: (i, 0)),
                pl.BlockSpec((1, 1, block_n), lambda i: (i, 0, 0)),
            ],
            out_specs=pl.BlockSpec((1, 1, block_n), lambda i: (i, 0, 0)),
        ),
        compiler_params=pltpu.CompilerParams(
            dimension_semantics=("parallel",),   # no cross-step state -> both TCs on v7x
            vmem_limit_bytes=48 << 20,
        ),
    )(logits, tgt3d)

    per_sample = per_sample.reshape(n_pad)[:n]
    if reduce:
        return jnp.mean(per_sample)
    return per_sample


def _focal_loss_ref(logits, targets, alpha=1.0, gamma=2.0, reduce=True):
    logits = logits.astype(jnp.float32)
    lse = jax.scipy.special.logsumexp(logits, axis=-1)
    tgt_logit = jnp.take_along_axis(logits, targets[:, None], axis=-1)[:, 0]
    ce = lse - tgt_logit
    pt = jnp.exp(-ce)
    f = alpha * (1.0 - pt) ** gamma * ce
    return jnp.mean(f) if reduce else f


if __name__ == "__main__":
    key = jax.random.PRNGKey(0)
    k1, k2, k3, k4 = jax.random.split(key, 4)

    # small shapes: 16 samples, 32 classes
    N, C = 16, 32
    logits = jax.random.normal(k1, (N, C), dtype=jnp.float32)
    targets = jax.random.randint(k2, (N,), 0, C, dtype=jnp.int32)

    out = focal_loss(logits, targets, alpha=1.0, gamma=2.0, reduce=True)
    out = jax.block_until_ready(out)
    ref = _focal_loss_ref(logits, targets)
    assert jnp.allclose(out, ref, rtol=1e-5, atol=1e-5), (out, ref)

    # reduce=False path
    out_ps = jax.block_until_ready(focal_loss(logits, targets, reduce=False))
    ref_ps = _focal_loss_ref(logits, targets, reduce=False)
    assert jnp.allclose(out_ps, ref_ps, rtol=1e-5, atol=1e-5)

    # non-aligned batch (exercises padding path)
    N2 = 13
    logits2 = jax.random.normal(k3, (N2, C), dtype=jnp.float32)
    targets2 = jax.random.randint(k4, (N2,), 0, C, dtype=jnp.int32)
    out2 = jax.block_until_ready(focal_loss(logits2, targets2))
    ref2 = _focal_loss_ref(logits2, targets2)
    assert jnp.allclose(out2, ref2, rtol=1e-5, atol=1e-5), (out2, ref2)

    print("KERNEL_OK")
</pallas_src>

<mosaic_0001>
module attributes {stable_mosaic.version = 11 : i64} {
  func.func @_focal_loss_kernel(%arg0: i32, %arg1: memref<16x32xf32, #tpu.memory_space<vmem>>, %arg2: memref<1x1x16xi32, #tpu.memory_space<vmem>>, %arg3: memref<1x1x16xf32, #tpu.memory_space<vmem>>) attributes {dimension_semantics = [#tpu.dimension_semantics<parallel>], iteration_bounds = array<i64: 1>, scalar_prefetch = 0 : i64, scratch_operands = 0 : i64, tpu.core_type = #tpu.core_type<tc>, window_params = [{transform_indices = @transform_0, window_bounds = array<i64: 16, 32>}, {transform_indices = @transform_1, window_bounds = array<i64: 1, 1, 16>}, {transform_indices = @transform_2, window_bounds = array<i64: 1, 1, 16>}]} {
    %c0 = arith.constant 0 : index
    %c0_0 = arith.constant 0 : index
    %0 = vector.load %arg1[%c0, %c0_0] : memref<16x32xf32, #tpu.memory_space<vmem>>, vector<16x32xf32>
    %c0_1 = arith.constant 0 : index
    %c0_2 = arith.constant 0 : index
    %c0_3 = arith.constant 0 : index
    %1 = vector.load %arg2[%c0_1, %c0_2, %c0_3] : memref<1x1x16xi32, #tpu.memory_space<vmem>>, vector<1x1x16xi32>
    %2 = vector.shape_cast %1 : vector<1x1x16xi32> to vector<1x16xi32>
    %3 = tpu.transpose %2, [1, 0] : vector<1x16xi32> -> vector<16x1xi32>
    %4 = tpu.iota {dimensions = array<i32: 1>} : vector<16x32xi32>
    %5 = vector.broadcast %3 : vector<16x1xi32> to vector<16x32xi32>
    %6 = arith.cmpi eq, %4, %5 : vector<16x32xi32>
    %cst = arith.constant 0.000000e+00 : f32
    %7 = vector.broadcast %cst : f32 to vector<16x32xf32>
    %8 = arith.select %6, %0, %7 : vector<16x32xi1>, vector<16x32xf32>
    %cst_4 = arith.constant dense<0.000000e+00> : vector<16xf32>
    %9 = vector.multi_reduction <add>, %8, %cst_4 [1] : vector<16x32xf32> to vector<16xf32>
    %10 = vector.shape_cast %9 : vector<16xf32> to vector<16x1xf32>
    %cst_5 = arith.constant dense<0xFF800000> : vector<16xf32>
    %11 = vector.multi_reduction <maximumf>, %0, %cst_5 [1] : vector<16x32xf32> to vector<16xf32>
    %12 = vector.shape_cast %11 : vector<16xf32> to vector<16x1xf32>
    %13 = vector.broadcast %12 : vector<16x1xf32> to vector<16x32xf32>
    %14 = arith.subf %0, %13 : vector<16x32xf32>
    %15 = math.exp %14 : vector<16x32xf32>
    %cst_6 = arith.constant dense<0.000000e+00> : vector<16xf32>
    %16 = vector.multi_reduction <add>, %15, %cst_6 [1] : vector<16x32xf32> to vector<16xf32>
    %17 = vector.shape_cast %16 : vector<16xf32> to vector<16x1xf32>
    %18 = math.log %17 : vector<16x1xf32>
    %19 = arith.addf %12, %18 : vector<16x1xf32>
    %20 = arith.subf %19, %10 : vector<16x1xf32>
    %cst_7 = arith.constant 0.000000e+00 : f32
    %21 = vector.broadcast %cst_7 : f32 to vector<16x1xf32>
    %22 = arith.maximumf %20, %21 : vector<16x1xf32>
    %cst_8 = arith.constant 0.000000e+00 : f32
    %23 = vector.broadcast %cst_8 : f32 to vector<16x1xf32>
    %24 = arith.subf %23, %22 : vector<16x1xf32>
    %25 = math.exp %24 : vector<16x1xf32>
    %cst_9 = arith.constant 1.000000e+00 : f32
    %26 = vector.broadcast %cst_9 : f32 to vector<16x1xf32>
    %27 = arith.subf %26, %25 : vector<16x1xf32>
    %28 = arith.mulf %27, %27 : vector<16x1xf32>
    %29 = arith.mulf %28, %22 : vector<16x1xf32>
    %30 = tpu.transpose %29, [1, 0] : vector<16x1xf32> -> vector<1x16xf32>
    %31 = vector.shape_cast %30 : vector<1x16xf32> to vector<1x1x16xf32>
    %c0_10 = arith.constant 0 : index
    %c0_11 = arith.constant 0 : index
    %c0_12 = arith.constant 0 : index
    %32 = vector.load %arg3[%c0_10, %c0_11, %c0_12] : memref<1x1x16xf32, #tpu.memory_space<vmem>>, vector<1x1x16xf32>
    tpu.vector_store %arg3[%c0_10, %c0_11, %c0_12], %31 {strides = array<i32>} : memref<1x1x16xf32, #tpu.memory_space<vmem>>, vector<1x1x16xf32>,
    return
  }
  func.func @transform_0(%arg0: i32) -> (i32, i32) {
    %c0_i32 = arith.constant 0 : i32
    %c0_i32_0 = arith.constant 0 : i32
    return %arg0, %c0_i32 : i32, i32
  }
  func.func @transform_1(%arg0: i32) -> (i32, i32, i32) {
    %c0_i32 = arith.constant 0 : i32
    %c0_i32_0 = arith.constant 0 : i32
    %c0_i32_1 = arith.constant 0 : i32
    return %arg0, %c0_i32, %c0_i32_0 : i32, i32, i32
  }
  func.func @transform_2(%arg0: i32) -> (i32, i32, i32) {
    %c0_i32 = arith.constant 0 : i32
    %c0_i32_0 = arith.constant 0 : i32
    %c0_i32_1 = arith.constant 0 : i32
    return %arg0, %c0_i32, %c0_i32_0 : i32, i32, i32
  }
}

</mosaic_0001>

<llo_original>
// kernel: tpu_custom_call.1
$region0: #{tpu_custom_call.1}
  #allocation0 [shape = 'u32[]', space=smem, size = 0x4, offset = 0x4, fixed_abs, tag = 'smem constant byte address 0x4 - core index']
  #allocation1 [shape = 'u32[144,128]{1,0:T(1,128)}', space=vmem, size = 0x12000, scoped, tag = 'internal scratch']
  %s0 = inlined_call_operand.hbm [shape: f32[16,32], index: 0, kind: input, shape index: {}]
  %s1 = inlined_call_operand.vmem [shape: s32[1,1,16], index: 1, kind: input, shape index: {}]
  %s2 = inlined_call_operand.hbm [shape: f32[1,1,16], index: 2, kind: output, shape index: {}]
  %s3 = sld [smem:[#allocation0]]
  $region22: #{tpu_custom_call.1} parent=0
    _
  %s5 = ssub.s32 1, %s3
  %s6 = scalar_select 0, %s5, %s3
  $region1: #{tpu_custom_call.1} parent=0
    #allocation2 [shape = 'u8[8192]{0}', space=vmem, size = 0x2000, scoped, tag = 'input window, operand 0, single buffered']
    #allocation3 [shape = 's32[1]{0}', space=sflag, size = 0x4, scoped, tag = 'scoped memory for tpu_custom_call.1']
    #allocation4 [shape = 's32[1]{0}', space=sflag, size = 0x4, scoped, tag = 'scoped memory for tpu_custom_call.1']
    #allocation5 [shape = 'u8[512]{0}', space=vmem, size = 0x400, scoped, tag = 'output window, operand 0, single buffered']
    %7 = vsyncpa [#allocation3], 0
    %8 = vsyncpa [#allocation4], 0
    // Predicated region
    $region2: #{tpu_custom_call.1} parent=1 // pred_check
      _
    $region3: #{tpu_custom_call.1} parent=1 // pred_check_branch
      %10 = sbr.rel (0) target = $region5
    $region4: #{tpu_custom_call.1} parent=1 // pred_region
      %s12 = ssub.s32 256, 256
      %13 = vsyncadd [#allocation3], %s12
      %s14 = sshll.u32 [#allocation2], 4
      %s15 = int_to_ptr.vmem [resolvable:$true] %s14
      %20 = dma.hbm_to_vmem [thread:$0]  %s0, 256, %s15, [#allocation3], 128, 128, 8
    $region5: #{tpu_custom_call.1} parent=1 // pred_fallthru
      _
    // Predicated region
    $region6: #{tpu_custom_call.1} parent=1 // pred_check
      _
    $region7: #{tpu_custom_call.1} parent=1 // pred_check_branch
      %22 = sbr.rel (0) target = $region9
    $region8: #{tpu_custom_call.1} parent=1 // pred_region
      _
    $region9: #{tpu_custom_call.1} parent=1 // pred_fallthru
      _
    // Predicated region
    $region10: #{tpu_custom_call.1} parent=1 // pred_check
      _
    $region11: #{tpu_custom_call.1} parent=1 // pred_check_branch
      %24 = sbr.rel (0) target = $region13
    $region12: #{tpu_custom_call.1} parent=1 // pred_region
      %25 = dma.done [#allocation3], 256
    $region13: #{tpu_custom_call.1} parent=1 // pred_fallthru
      _
    %v26 = vld [vmem:[#allocation2] sm:$0xff]
    %v27 = vld [vmem:[#allocation2 + $0x8] sm:$0xff]
    %v28 = vld [vmem:[%s1] sm:$0x1]
    %29 = vxpose.xlu0.b32.start [1/16] %v28, 128
    %30 = vxpose.xlu0.b32.cont [2/16] 0, 128
    %31 = vxpose.xlu0.b32.cont [3/16] 0, 128
    %32 = vxpose.xlu0.b32.cont [4/16] 0, 128
    %33 = vxpose.xlu0.b32.cont [5/16] 0, 128
    %34 = vxpose.xlu0.b32.cont [6/16] 0, 128
    %35 = vxpose.xlu0.b32.cont [7/16] 0, 128
    %36 = vxpose.xlu0.b32.cont [8/16] 0, 128
    %37 = vxpose.xlu0.b32.cont [9/16] 0, 128
    %38 = vxpose.xlu0.b32.cont [10/16] 0, 128
    %39 = vxpose.xlu0.b32.cont [11/16] 0, 128
    %40 = vxpose.xlu0.b32.cont [12/16] 0, 128
    %41 = vxpose.xlu0.b32.cont [13/16] 0, 128
    %42 = vxpose.xlu0.b32.cont [14/16] 0, 128
    %43 = vxpose.xlu0.b32.cont [15/16] 0, 128
    %44 = vxpose.xlu0.b32.end [16/16] 0, 128
    %v45 = vpop.trf.xlu0
    %v46 = vpop.trf.xlu0
    %v47 = vpop.trf.xlu0
    %v48 = vpop.trf.xlu0
    %v49 = vpop.trf.xlu0
    %v50 = vpop.trf.xlu0
    %v51 = vpop.trf.xlu0
    %v52 = vpop.trf.xlu0
    %v53 = vpop.trf.xlu0
    %v54 = vpop.trf.xlu0
    %v55 = vpop.trf.xlu0
    %v56 = vpop.trf.xlu0
    %v57 = vpop.trf.xlu0
    %v58 = vpop.trf.xlu0
    %v59 = vpop.trf.xlu0
    %v60 = vpop.trf.xlu0
    %v61 = vlaneseq
    %v62 = vand.u32 %v61, 127
    %63 = vset.pattern.permute.xlu0 0
    %64 = vperm.xlu0 %63, %v45
    %v65 = vpop.permute.xlu0 %64
    %66 = vset.pattern.permute.xlu0 0
    %67 = vperm.xlu0 %66, %v46
    %v68 = vpop.permute.xlu0 %67
    %vm69 = vcmp.eq.s32.totalorder %v62, %v65
    %vm70 = vcmp.eq.s32.totalorder %v62, %v68
    %v71 = vsel %vm69, %v26, 0.0
    %v72 = vsel %vm70, %v27, 0.0
    %vm73 = vcmask 261120
    %v74 = vsel %vm73, %v71, 0.0
    %75 = vadd.xlane.f32.xlu0 %v74
    %v76 = vpop.xlane.xlu0 %75
    %v77 = vsel %vm73, %v72, 0.0
    %78 = vadd.xlane.f32.xlu0 %v77
    %v79 = vpop.xlane.xlu0 %78
    %v80 = vsel %vm73, %v26, -inf
    %81 = vmax.xlane.f32.xlu0 %v80
    %v82 = vpop.xlane.xlu0 %81
    %v83 = vsel %vm73, %v27, -inf
    %84 = vmax.xlane.f32.xlu0 %v83
    %v85 = vpop.xlane.xlu0 %84
    %v86 = vsub.f32 %v26, %v82
    %v87 = vsub.f32 %v27, %v85
    %v88 = vmul.f32 %v86, 1.442695
    %v89 = vpow.pop %v88
    %v90 = vmul.f32 %v87, 1.442695
    %v91 = vpow.pop %v90
    %v92 = vsel %vm73, %v89, 0.0
    %93 = vadd.xlane.f32.xlu0 %v92
    %v94 = vpop.xlane.xlu0 %93
    %v95 = vsel %vm73, %v91, 0.0
    %96 = vadd.xlane.f32.xlu0 %v95
    %v97 = vpop.xlane.xlu0 %96
    %v98 = vlog2.pop %v94
    %v99 = vmul.f32 %v98, 0.6931472
    %v100 = vlog2.pop %v97
    %v101 = vmul.f32 %v100, 0.6931472
    %v102 = vadd.f32 %v82, %v99
    %v103 = vadd.f32 %v85, %v101
    %v104 = vsub.f32 %v102, %v76
    %v105 = vsub.f32 %v103, %v79
    %v106 = vmax.f32 %v104, 0.0
    %v107 = vmax.f32 %v105, 0.0
    %v108 = vsub.f32 0.0, %v106
    %v109 = vsub.f32 0.0, %v107
    %v110 = vmul.f32 %v108, 1.442695
    %v111 = vpow.pop %v110
    %v112 = vmul.f32 %v109, 1.442695
    %v113 = vpow.pop %v112
    %v114 = vsub.f32 1.0, %v111
    %v115 = vsub.f32 1.0, %v113
    %v116 = vmul.f32 %v114, %v114
    %v117 = vmul.f32 %v115, %v115
    %v118 = vmul.f32 %v116, %v106
    %v119 = vmul.f32 %v117, %v107
    %120 = vxpose.xlu0.b32.start [1/16] %v118, 128
    %121 = vxpose.xlu0.b32.cont [2/16] %v119, 128
    %122 = vxpose.xlu0.b32.cont [3/16] 0.0, 128
    %123 = vxpose.xlu0.b32.cont [4/16] 0.0, 128
    %124 = vxpose.xlu0.b32.cont [5/16] 0.0, 128
    %125 = vxpose.xlu0.b32.cont [6/16] 0.0, 128
    %126 = vxpose.xlu0.b32.cont [7/16] 0.0, 128
    %127 = vxpose.xlu0.b32.cont [8/16] 0.0, 128
    %128 = vxpose.xlu0.b32.cont [9/16] 0.0, 128
    %129 = vxpose.xlu0.b32.cont [10/16] 0.0, 128
    %130 = vxpose.xlu0.b32.cont [11/16] 0.0, 128
    %131 = vxpose.xlu0.b32.cont [12/16] 0.0, 128
    %132 = vxpose.xlu0.b32.cont [13/16] 0.0, 128
    %133 = vxpose.xlu0.b32.cont [14/16] 0.0, 128
    %134 = vxpose.xlu0.b32.cont [15/16] 0.0, 128
    %135 = vxpose.xlu0.b32.end [16/16] 0.0, 128
    %v136 = vpop.trf.xlu0
    %v137 = vpop.trf.xlu0
    %v138 = vpop.trf.xlu0
    %v139 = vpop.trf.xlu0
    %v140 = vpop.trf.xlu0
    %v141 = vpop.trf.xlu0
    %v142 = vpop.trf.xlu0
    %v143 = vpop.trf.xlu0
    %v144 = vpop.trf.xlu0
    %v145 = vpop.trf.xlu0
    %v146 = vpop.trf.xlu0
    %v147 = vpop.trf.xlu0
    %v148 = vpop.trf.xlu0
    %v149 = vpop.trf.xlu0
    %v150 = vpop.trf.xlu0
    %v151 = vpop.trf.xlu0
    %vm152 = vcmask 122880
    %153 = vst.msk [vmem:[#allocation5] sm:$0x1] %vm152, %v136
    // Predicated region
    $region14: #{tpu_custom_call.1} parent=1 // pred_check
      _
    $region15: #{tpu_custom_call.1} parent=1 // pred_check_branch
      %155 = sbr.rel (0) target = $region17
    $region16: #{tpu_custom_call.1} parent=1 // pred_region
      %s157 = ssub.s32 16, 16
      %158 = vsyncadd [#allocation4], %s157
      %s160 = sshll.u32 [#allocation5], 4
      %s161 = int_to_ptr.vmem [resolvable:$true] %s160
      %163 = dma.vmem_to_hbm [thread:$0]  %s161, 16, %s2, [#allocation4]
    $region17: #{tpu_custom_call.1} parent=1 // pred_fallthru
      _
    // Predicated region
    $region18: #{tpu_custom_call.1} parent=1 // pred_check
      _
    $region19: #{tpu_custom_call.1} parent=1 // pred_check_branch
      %165 = sbr.rel (0) target = $region21
    $region20: #{tpu_custom_call.1} parent=1 // pred_region
      %166 = dma.done [#allocation4], 16
    $region21: #{tpu_custom_call.1} parent=1 // pred_fallthru
      _
    %167 = vsyncpa [#allocation3], 1
    %168 = vsyncpa [#allocation4], 1

</llo_original>
